<compile_context>
chip_gen: v5e
topology: v5e:2x2
jax: 0.10.0
libtpu: 0.0.40
codegen_flags: <defaults>
</compile_context>

<pallas_src>
import math

import jax
import jax.numpy as jnp
from jax.experimental import pallas as pl
from jax.experimental.pallas import tpu as pltpu

LANE = 128      # TPU lane width: weight feature dims are padded to this
SUBLANE = 8     # sublane granularity for the batch tile


def _round_up(n, m):
    return ((n + m - 1) // m) * m


def _device_kind():
    try:
        return jax.devices()[0].device_kind.lower()
    except Exception:
        return ""


def _on_tpu():
    try:
        return jax.devices()[0].platform == "tpu"
    except Exception:
        return False


def _default_compute_dtype():
    # bf16-native VPU/EUP only on v6e / v7x; keep f32 elementwise on v5e & older.
    kind = _device_kind()
    if ("v6" in kind) or ("v7" in kind) or ("7x" in kind):
        return jnp.bfloat16
    return jnp.float32


# ----------------------------------------------------------------------------
# Fallback stateless PRNG (non-TPU / interpret mode only): splitmix-style hash.
# ----------------------------------------------------------------------------
def _hash_u32(x):
    x = x ^ (x >> 16)
    x = x * jnp.uint32(0x7FEB352D)
    x = x ^ (x >> 15)
    x = x * jnp.uint32(0x846CA68B)
    x = x ^ (x >> 16)
    return x


def _hash_bits(shape, seed, layer_idx):
    rows = jax.lax.broadcasted_iota(jnp.int32, shape, 0)
    cols = jax.lax.broadcasted_iota(jnp.int32, shape, 1)
    idx = (rows * jnp.int32(shape[1]) + cols).astype(jnp.uint32)
    salt = (seed * jnp.int32(1000003)
            + pl.program_id(0) * jnp.int32(7919)
            + jnp.int32(101 * (layer_idx + 1))).astype(jnp.uint32)
    return _hash_u32(idx ^ salt)


# ----------------------------------------------------------------------------
# Kernel
# ----------------------------------------------------------------------------
def make_mlp_kernel(activations, dropout_ps, training, *, d_in, d_in_p, out_dim,
                    compute_dtype, use_hw_prng):
    n_hidden = len(activations)
    assert len(dropout_ps) == n_hidden
    for a in activations:
        if a not in ("relu", "elu"):
            raise ValueError(f"unknown activation {a}")

    needs_pad = d_in != d_in_p
    use_dropout = bool(training) and any(float(p) > 0.0 for p in dropout_ps)
    matmul_dtype = jnp.bfloat16

    def kernel(seed_ref, *refs):
        # refs = (x, w0, b0, ..., w_out, b_out, o [, x_pad_scratch])
        if needs_pad:
            x_pad_ref = refs[-1]
            refs = refs[:-1]
        x_ref, o_ref = refs[0], refs[-1]
        params = refs[1:-1]

        if use_dropout and use_hw_prng:
            # one stream per (seed, batch tile); each prng_random_bits call
            # below advances the stream, decorrelating the layers.
            pltpu.prng_seed(seed_ref[0], pl.program_id(0))

        if needs_pad:
            # zero-pad the true-width x tile to 128 lanes in VMEM.  Done every
            # grid step so it is megacore-safe under "parallel" sharding.
            x_pad_ref[...] = jnp.zeros_like(x_pad_ref)
            x_pad_ref[:, :d_in] = x_ref[...]
            h = x_pad_ref[...].astype(compute_dtype)
        else:
            h = x_ref[...].astype(compute_dtype)

        for i in range(n_hidden):
            w = params[2 * i][...]          # bf16, VMEM-resident
            b = params[2 * i + 1][...]      # compute_dtype
            acc = jnp.dot(h.astype(matmul_dtype), w,
                          preferred_element_type=jnp.float32)
            a = acc.astype(compute_dtype) + b
            if activations[i] == "relu":
                a = jnp.maximum(a, 0)
            else:  # elu (alpha=1); exp runs on the EUP slot
                a = jnp.where(a > 0, a, jnp.exp(a) - 1)
            p = float(dropout_ps[i])
            if training and p > 0.0:
                if use_hw_prng:
                    bits = pltpu.prng_random_bits(a.shape)
                    if bits.dtype != jnp.uint32:
                        bits = pltpu.bitcast(bits, jnp.uint32)
                else:
                    bits = _hash_bits(a.shape, seed_ref[0], i)
                # top-31 bits + signed compare against an integer threshold
                thr31 = min(int(round(p * float(1 << 31))), (1 << 31) - 1)
                keep = (bits >> 1).astype(jnp.int32) >= jnp.int32(thr31)
                # 1/(1-p) rescale is folded into the NEXT layer's weights.
                a = jnp.where(keep, a, 0)
            h = a

        w_out = params[-2][...]
        b_out = params[-1][...]             # f32
        out = jnp.dot(h.astype(matmul_dtype), w_out,
                      preferred_element_type=jnp.float32) + b_out
        # store only the true output width (lean HBM writeback)
        o_ref[...] = out[:, :out_dim].astype(o_ref.dtype)

    return kernel


# ----------------------------------------------------------------------------
# Wrapper
# ----------------------------------------------------------------------------
def dropout_ffnn_forward(x, params, activations, dropout_ps, seed,
                         training=True, max_tile_b=None, compute_dtype=None,
                         use_hw_prng=None, single_buffer_weights=True):
    """
    x:       (B, input_dim) float32
    params:  list of (W, b) with W (in, out) and b (1, out), float32
    returns: (B, output_dim) float32
    """
    B, d_in = x.shape
    out_dim = params[-1][0].shape[1]
    n_layers = len(params)
    n_hidden = n_layers - 1
    assert len(activations) == n_hidden and len(dropout_ps) == n_hidden

    kind = _device_kind()
    is_v7 = ("v7" in kind) or ("7x" in kind)
    if compute_dtype is None:
        compute_dtype = _default_compute_dtype()
    if use_hw_prng is None:
        use_hw_prng = _on_tpu()
    if max_tile_b is None:
        max_tile_b = 512 if is_v7 else 1024   # re-derived for 64 MiB/TC on v7x

    # ---- feature dims: only weights are lane-padded; x / out keep true width
    dims = [d_in] + [w.shape[1] for w, _ in params]
    dims_p = [_round_up(d, LANE) for d in dims]

    # fold the inverted-dropout scale 1/(1-p_i) into the following linear layer
    scales = [1.0] * n_layers
    if training:
        for i, p in enumerate(dropout_ps):
            if float(p) > 0.0:
                scales[i + 1] = 1.0 / (1.0 - float(p))

    matmul_dtype = jnp.bfloat16
    flat_params = []
    for li, (w, b) in enumerate(params):
        b = jnp.reshape(b, (1, -1))
        w_p = jnp.pad(w * jnp.float32(scales[li]),
                      ((0, dims_p[li] - w.shape[0]),
                       (0, dims_p[li + 1] - w.shape[1])))
        b_p = jnp.pad(b, ((0, 0), (0, dims_p[li + 1] - b.shape[1])))
        b_dt = jnp.float32 if li == n_layers - 1 else compute_dtype
        flat_params.append(w_p.astype(matmul_dtype))   # MXU-native operands
        flat_params.append(b_p.astype(b_dt))

    # ---- balanced batch tiling (minimize last-tile padding) ----
    n_tiles = max(1, -(-B // max_tile_b))
    tile_b = _round_up(-(-B // n_tiles), SUBLANE)
    B_p = _round_up(B, tile_b)
    grid = (B_p // tile_b,)
    x_p = x if B_p == B else jnp.pad(x, ((0, B_p - B), (0, 0)))

    needs_pad = d_in != dims_p[0]
    kernel = make_mlp_kernel(activations, dropout_ps, training,
                             d_in=d_in, d_in_p=dims_p[0], out_dim=out_dim,
                             compute_dtype=compute_dtype,
                             use_hw_prng=use_hw_prng)

    scratch_shapes = ([pltpu.VMEM((tile_b, dims_p[0]), x_p.dtype)]
                      if needs_pad else [])

    # ---- explicit VMEM budget: resident weights (+2x margin for buffering),
    # x/out pipeline double buffers, pad scratch, a few live f32 intermediates.
    nbytes = lambda a: a.size * a.dtype.itemsize
    resident = 2 * sum(nbytes(a) for a in flat_params)
    pipeline = 2 * tile_b * d_in * x_p.dtype.itemsize + 2 * tile_b * out_dim * 4
    scratch_b = tile_b * dims_p[0] * x_p.dtype.itemsize if needs_pad else 0
    interm = 4 * tile_b * max(dims_p) * 4
    need = resident + pipeline + scratch_b + interm + (4 << 20)
    vmem_cap = (56 << 20) if is_v7 else (100 << 20)
    vmem_limit = int(min(max(need, 16 << 20), vmem_cap))

    def build(single_buffer):
        def resident_spec(shape):
            idx_map = lambda i, seed: (0, 0)   # constant -> stays in VMEM
            if single_buffer and hasattr(pl, "Buffered"):
                try:
                    return pl.BlockSpec(shape, idx_map,
                                        pipeline_mode=pl.Buffered(1))
                except Exception:
                    pass
            return pl.BlockSpec(shape, idx_map)

        # x block: true feature width (== full array extent) -> lean input DMA
        in_specs = [pl.BlockSpec((tile_b, d_in), lambda i, seed: (i, 0))]
        in_specs += [resident_spec(a.shape) for a in flat_params]
        # output at true width -> lean HBM writeback
        out_spec = pl.BlockSpec((tile_b, out_dim), lambda i, seed: (i, 0))

        return pl.pallas_call(
            kernel,
            grid_spec=pltpu.PrefetchScalarGridSpec(
                num_scalar_prefetch=1,          # seed lives in SMEM
                grid=grid,
                in_specs=in_specs,
                out_specs=out_spec,
                scratch_shapes=scratch_shapes,
            ),
            out_shape=jax.ShapeDtypeStruct((B_p, out_dim), jnp.float32),
            compiler_params=pltpu.CompilerParams(
                dimension_semantics=("parallel",),   # megacore sharding on v7x
                vmem_limit_bytes=vmem_limit,
            ),
        )

    seed_arr = jnp.asarray([seed], dtype=jnp.int32)
    try:
        y_p = build(single_buffer_weights)(seed_arr, x_p, *flat_params)
    except Exception:
        if not single_buffer_weights:
            raise
        # fall back to default (double-buffered) resident weights
        y_p = build(False)(seed_arr, x_p, *flat_params)
    return y_p[:B, :]


# ----------------------------------------------------------------------------
# Deterministic parameter init (matches nn.Linear + xavier_uniform_ shapes)
# ----------------------------------------------------------------------------
def init_params(key, input_dim, n_units, output_dim):
    d_ins = [input_dim] + n_units
    d_outs = n_units + [output_dim]
    params = []
    for d_in, d_out in zip(d_ins, d_outs):
        key, kw, kb = jax.random.split(key, 3)
        bound_w = math.sqrt(6.0 / (d_in + d_out))            # xavier_uniform_
        w = jax.random.uniform(kw, (d_in, d_out), jnp.float32, -bound_w, bound_w)
        bound_b = 1.0 / math.sqrt(d_in)                      # torch bias default
        b = jax.random.uniform(kb, (1, d_out), jnp.float32, -bound_b, bound_b)
        params.append((w, b))
    return params


# Pure-JAX eval-mode reference mirroring the kernel's dtype choices.
def reference_eval(x, params, activations, compute_dtype=jnp.float32):
    mm = jnp.bfloat16
    h = x.astype(compute_dtype)
    for i, (w, b) in enumerate(params[:-1]):
        acc = jnp.dot(h.astype(mm), w.astype(mm),
                      preferred_element_type=jnp.float32)
        a = acc.astype(compute_dtype) + jnp.reshape(b, (1, -1)).astype(compute_dtype)
        if activations[i] == "relu":
            a = jnp.maximum(a, 0)
        else:  # elu
            a = jnp.where(a > 0, a, jnp.exp(a) - 1)
        h = a
    w, b = params[-1]
    return (jnp.dot(h.astype(mm), w.astype(mm),
                    preferred_element_type=jnp.float32)
            + jnp.reshape(b, (1, -1)).astype(jnp.float32))


# ----------------------------------------------------------------------------
if __name__ == "__main__":
    # Module configuration (small, consistent with DropoutFFNN defaults style)
    input_dim = 4
    n_units = [32, 16]
    activations = ["relu", "elu"]
    dropout_ps = [0.05, 0.05]
    output_dim = 1
    batch = 8

    key = jax.random.PRNGKey(0)
    key, kx = jax.random.split(key)
    x = jax.random.normal(kx, (batch, input_dim), dtype=jnp.float32)
    params = init_params(key, input_dim, n_units, output_dim)

    # 1) eval-mode run (dropout inactive) -> check against pure-JAX reference
    y_eval = dropout_ffnn_forward(x, params, activations, dropout_ps,
                                  seed=0, training=False)
    y_eval = jax.block_until_ready(y_eval)
    y_ref = reference_eval(x, params, activations,
                           compute_dtype=_default_compute_dtype())
    assert y_eval.shape == (batch, output_dim)
    assert jnp.allclose(y_eval, y_ref, atol=2e-2, rtol=2e-2), "eval mismatch"

    # 2) train-mode run (dropout active via TPU hardware PRNG)
    y_train = dropout_ffnn_forward(x, params, activations, dropout_ps,
                                   seed=1234, training=True)
    y_train = jax.block_until_ready(y_train)
    assert y_train.shape == (batch, output_dim)
    assert bool(jnp.all(jnp.isfinite(y_train)))

    print("KERNEL_OK")
</pallas_src>

<mosaic_0001>
module attributes {stable_mosaic.version = 11 : i64} {
  func.func @kernel(%arg0: i32, %arg1: memref<1xi32, #tpu.memory_space<smem>>, %arg2: memref<8x4xf32, #tpu.memory_space<vmem>>, %arg3: memref<128x128xbf16, #tpu.memory_space<vmem>>, %arg4: memref<1x128xf32, #tpu.memory_space<vmem>>, %arg5: memref<128x128xbf16, #tpu.memory_space<vmem>>, %arg6: memref<1x128xf32, #tpu.memory_space<vmem>>, %arg7: memref<128x128xbf16, #tpu.memory_space<vmem>>, %arg8: memref<1x128xf32, #tpu.memory_space<vmem>>, %arg9: memref<8x1xf32, #tpu.memory_space<vmem>>, %arg10: memref<8x128xf32, #tpu.memory_space<vmem>>) attributes {dimension_semantics = [#tpu.dimension_semantics<parallel>], iteration_bounds = array<i64: 1>, scalar_prefetch = 1 : i64, scratch_operands = 1 : i64, tpu.core_type = #tpu.core_type<tc>, window_params = [{transform_indices = @transform_0, window_bounds = array<i64: 8, 4>}, {pipeline_mode = #tpu.pipeline_mode<synchronous>, transform_indices = @transform_1, window_bounds = array<i64: 128, 128>}, {pipeline_mode = #tpu.pipeline_mode<synchronous>, transform_indices = @transform_2, window_bounds = array<i64: 1, 128>}, {pipeline_mode = #tpu.pipeline_mode<synchronous>, transform_indices = @transform_3, window_bounds = array<i64: 128, 128>}, {pipeline_mode = #tpu.pipeline_mode<synchronous>, transform_indices = @transform_4, window_bounds = array<i64: 1, 128>}, {pipeline_mode = #tpu.pipeline_mode<synchronous>, transform_indices = @transform_5, window_bounds = array<i64: 128, 128>}, {pipeline_mode = #tpu.pipeline_mode<synchronous>, transform_indices = @transform_6, window_bounds = array<i64: 1, 128>}, {transform_indices = @transform_7, window_bounds = array<i64: 8, 1>}]} {
    %cst = arith.constant 0.000000e+00 : f32
    %0 = vector.broadcast %cst : f32 to vector<8x128xf32>
    %c0 = arith.constant 0 : index
    %c0_0 = arith.constant 0 : index
    %1 = vector.load %arg10[%c0, %c0_0] : memref<8x128xf32, #tpu.memory_space<vmem>>, vector<8x128xf32>
    tpu.vector_store %arg10[%c0, %c0_0], %0 {strides = array<i32>} : memref<8x128xf32, #tpu.memory_space<vmem>>, vector<8x128xf32>,
    %c0_1 = arith.constant 0 : index
    %c0_2 = arith.constant 0 : index
    %2 = vector.load %arg2[%c0_1, %c0_2] : memref<8x4xf32, #tpu.memory_space<vmem>>, vector<8x4xf32>
    %c0_3 = arith.constant 0 : index
    %c0_4 = arith.constant 0 : index
    %3 = vector.load %arg10[%c0_3, %c0_4] : memref<8x128xf32, #tpu.memory_space<vmem>>, vector<8x4xf32>
    tpu.vector_store %arg10[%c0_3, %c0_4], %2 {strides = array<i32>} : memref<8x128xf32, #tpu.memory_space<vmem>>, vector<8x4xf32>,
    %c0_5 = arith.constant 0 : index
    %c0_6 = arith.constant 0 : index
    %4 = vector.load %arg10[%c0_5, %c0_6] : memref<8x128xf32, #tpu.memory_space<vmem>>, vector<8x128xf32>
    %c0_7 = arith.constant 0 : index
    %c0_8 = arith.constant 0 : index
    %5 = vector.load %arg3[%c0_7, %c0_8] : memref<128x128xbf16, #tpu.memory_space<vmem>>, vector<128x128xbf16>
    %c0_9 = arith.constant 0 : index
    %c0_10 = arith.constant 0 : index
    %6 = vector.load %arg4[%c0_9, %c0_10] : memref<1x128xf32, #tpu.memory_space<vmem>>, vector<1x128xf32>
    %7 = arith.truncf %4 : vector<8x128xf32> to vector<8x128xbf16>
    %cst_11 = arith.constant dense<0.000000e+00> : vector<8x128xf32>
    %8 = tpu.matmul %7, %5, %cst_11 {dimension_numbers = #tpu.dot_dimension_numbers<[1], [0], [0], [1], [0, 0, 1, 1], [], []>} : vector<8x128xbf16>, vector<128x128xbf16>, vector<8x128xf32> -> vector<8x128xf32>
    %9 = vector.broadcast %6 : vector<1x128xf32> to vector<8x128xf32>
    %10 = arith.addf %8, %9 : vector<8x128xf32>
    %cst_12 = arith.constant 0.000000e+00 : f32
    %11 = vector.broadcast %cst_12 : f32 to vector<8x128xf32>
    %12 = arith.maximumf %10, %11 : vector<8x128xf32>
    %c0_13 = arith.constant 0 : index
    %c0_14 = arith.constant 0 : index
    %13 = vector.load %arg5[%c0_13, %c0_14] : memref<128x128xbf16, #tpu.memory_space<vmem>>, vector<128x128xbf16>
    %c0_15 = arith.constant 0 : index
    %c0_16 = arith.constant 0 : index
    %14 = vector.load %arg6[%c0_15, %c0_16] : memref<1x128xf32, #tpu.memory_space<vmem>>, vector<1x128xf32>
    %15 = arith.truncf %12 : vector<8x128xf32> to vector<8x128xbf16>
    %cst_17 = arith.constant dense<0.000000e+00> : vector<8x128xf32>
    %16 = tpu.matmul %15, %13, %cst_17 {dimension_numbers = #tpu.dot_dimension_numbers<[1], [0], [0], [1], [0, 0, 1, 1], [], []>} : vector<8x128xbf16>, vector<128x128xbf16>, vector<8x128xf32> -> vector<8x128xf32>
    %17 = vector.broadcast %14 : vector<1x128xf32> to vector<8x128xf32>
    %18 = arith.addf %16, %17 : vector<8x128xf32>
    %cst_18 = arith.constant 0.000000e+00 : f32
    %19 = vector.broadcast %cst_18 : f32 to vector<8x128xf32>
    %20 = arith.cmpf ogt, %18, %19 : vector<8x128xf32>
    %21 = math.exp %18 : vector<8x128xf32>
    %cst_19 = arith.constant 1.000000e+00 : f32
    %22 = vector.broadcast %cst_19 : f32 to vector<8x128xf32>
    %23 = arith.subf %21, %22 : vector<8x128xf32>
    %24 = arith.select %20, %18, %23 : vector<8x128xi1>, vector<8x128xf32>
    %c0_20 = arith.constant 0 : index
    %c0_21 = arith.constant 0 : index
    %25 = vector.load %arg7[%c0_20, %c0_21] : memref<128x128xbf16, #tpu.memory_space<vmem>>, vector<128x128xbf16>
    %c0_22 = arith.constant 0 : index
    %c0_23 = arith.constant 0 : index
    %26 = vector.load %arg8[%c0_22, %c0_23] : memref<1x128xf32, #tpu.memory_space<vmem>>, vector<1x128xf32>
    %27 = arith.truncf %24 : vector<8x128xf32> to vector<8x128xbf16>
    %cst_24 = arith.constant dense<0.000000e+00> : vector<8x128xf32>
    %28 = tpu.matmul %27, %25, %cst_24 {dimension_numbers = #tpu.dot_dimension_numbers<[1], [0], [0], [1], [0, 0, 1, 1], [], []>} : vector<8x128xbf16>, vector<128x128xbf16>, vector<8x128xf32> -> vector<8x128xf32>
    %29 = vector.broadcast %26 : vector<1x128xf32> to vector<8x128xf32>
    %30 = arith.addf %28, %29 : vector<8x128xf32>
    %31 = vector.extract_strided_slice %30 {offsets = [0, 0], sizes = [8, 1], strides = [1, 1]} : vector<8x128xf32> to vector<8x1xf32>
    %c0_25 = arith.constant 0 : index
    %c0_26 = arith.constant 0 : index
    %32 = vector.load %arg9[%c0_25, %c0_26] : memref<8x1xf32, #tpu.memory_space<vmem>>, vector<8x1xf32>
    tpu.vector_store %arg9[%c0_25, %c0_26], %31 {strides = array<i32>} : memref<8x1xf32, #tpu.memory_space<vmem>>, vector<8x1xf32>,
    return
  }
  func.func @transform_0(%arg0: i32, %arg1: memref<1xi32, #tpu.memory_space<smem>>) -> (i32, i32) {
    %c0_i32 = arith.constant 0 : i32
    %c0_i32_0 = arith.constant 0 : i32
    return %arg0, %c0_i32 : i32, i32
  }
  func.func @transform_1(%arg0: i32, %arg1: memref<1xi32, #tpu.memory_space<smem>>) -> (i32, i32) {
    %c0_i32 = arith.constant 0 : i32
    %c0_i32_0 = arith.constant 0 : i32
    %c0_i32_1 = arith.constant 0 : i32
    return %c0_i32, %c0_i32_0 : i32, i32
  }
  func.func @transform_2(%arg0: i32, %arg1: memref<1xi32, #tpu.memory_space<smem>>) -> (i32, i32) {
    %c0_i32 = arith.constant 0 : i32
    %c0_i32_0 = arith.constant 0 : i32
    %c0_i32_1 = arith.constant 0 : i32
    return %c0_i32, %c0_i32_0 : i32, i32
  }
  func.func @transform_3(%arg0: i32, %arg1: memref<1xi32, #tpu.memory_space<smem>>) -> (i32, i32) {
    %c0_i32 = arith.constant 0 : i32
    %c0_i32_0 = arith.constant 0 : i32
    %c0_i32_1 = arith.constant 0 : i32
    return %c0_i32, %c0_i32_0 : i32, i32
  }
  func.func @transform_4(%arg0: i32, %arg1: memref<1xi32, #tpu.memory_space<smem>>) -> (i32, i32) {
    %c0_i32 = arith.constant 0 : i32
    %c0_i32_0 = arith.constant 0 : i32
    %c0_i32_1 = arith.constant 0 : i32
    return %c0_i32, %c0_i32_0 : i32, i32
  }
  func.func @transform_5(%arg0: i32, %arg1: memref<1xi32, #tpu.memory_space<smem>>) -> (i32, i32) {
    %c0_i32 = arith.constant 0 : i32
    %c0_i32_0 = arith.constant 0 : i32
    %c0_i32_1 = arith.constant 0 : i32
    return %c0_i32, %c0_i32_0 : i32, i32
  }
  func.func @transform_6(%arg0: i32, %arg1: memref<1xi32, #tpu.memory_space<smem>>) -> (i32, i32) {
    %c0_i32 = arith.constant 0 : i32
    %c0_i32_0 = arith.constant 0 : i32
    %c0_i32_1 = arith.constant 0 : i32
    return %c0_i32, %c0_i32_0 : i32, i32
  }
  func.func @transform_7(%arg0: i32, %arg1: memref<1xi32, #tpu.memory_space<smem>>) -> (i32, i32) {
    %c0_i32 = arith.constant 0 : i32
    %c0_i32_0 = arith.constant 0 : i32
    return %arg0, %c0_i32 : i32, i32
  }
}

module attributes {stable_mosaic.version = 11 : i64} {
  func.func @kernel(%arg0: i32, %arg1: memref<1xi32, #tpu.memory_space<smem>>, %arg2: memref<8x4xf32, #tpu.memory_space<vmem>>, %arg3: memref<128x128xbf16, #tpu.memory_space<vmem>>, %arg4: memref<1x128xf32, #tpu.memory_space<vmem>>, %arg5: memref<128x128xbf16, #tpu.memory_space<vmem>>, %arg6: memref<1x128xf32, #tpu.memory_space<vmem>>, %arg7: memref<128x128xbf16, #tpu.memory_space<vmem>>, %arg8: memref<1x128xf32, #tpu.memory_space<vmem>>, %arg9: memref<8x1xf32, #tpu.memory_space<vmem>>, %arg10: memref<8x128xf32, #tpu.memory_space<vmem>>) attributes {dimension_semantics = [#tpu.dimension_semantics<parallel>], iteration_bounds = array<i64: 1>, scalar_prefetch = 1 : i64, scratch_operands = 1 : i64, tpu.core_type = #tpu.core_type<tc>, window_params = [{transform_indices = @transform_0, window_bounds = array<i64: 8, 4>}, {pipeline_mode = #tpu.pipeline_mode<synchronous>, transform_indices = @transform_1, window_bounds = array<i64: 128, 128>}, {pipeline_mode = #tpu.pipeline_mode<synchronous>, transform_indices = @transform_2, window_bounds = array<i64: 1, 128>}, {pipeline_mode = #tpu.pipeline_mode<synchronous>, transform_indices = @transform_3, window_bounds = array<i64: 128, 128>}, {pipeline_mode = #tpu.pipeline_mode<synchronous>, transform_indices = @transform_4, window_bounds = array<i64: 1, 128>}, {pipeline_mode = #tpu.pipeline_mode<synchronous>, transform_indices = @transform_5, window_bounds = array<i64: 128, 128>}, {pipeline_mode = #tpu.pipeline_mode<synchronous>, transform_indices = @transform_6, window_bounds = array<i64: 1, 128>}, {transform_indices = @transform_7, window_bounds = array<i64: 8, 1>}]} {
    %cst = arith.constant 0.000000e+00 : f32
    %0 = vector.broadcast %cst : f32 to vector<8x128xf32>
    %c0 = arith.constant 0 : index
    %c0_0 = arith.constant 0 : index
    %1 = vector.load %arg10[%c0, %c0_0] : memref<8x128xf32, #tpu.memory_space<vmem>>, vector<8x128xf32>
    tpu.vector_store %arg10[%c0, %c0_0], %0 {strides = array<i32>} : memref<8x128xf32, #tpu.memory_space<vmem>>, vector<8x128xf32>,
    %c0_1 = arith.constant 0 : index
    %c0_2 = arith.constant 0 : index
    %2 = vector.load %arg2[%c0_1, %c0_2] : memref<8x4xf32, #tpu.memory_space<vmem>>, vector<8x4xf32>
    %c0_3 = arith.constant 0 : index
    %c0_4 = arith.constant 0 : index
    %3 = vector.load %arg10[%c0_3, %c0_4] : memref<8x128xf32, #tpu.memory_space<vmem>>, vector<8x4xf32>
    tpu.vector_store %arg10[%c0_3, %c0_4], %2 {strides = array<i32>} : memref<8x128xf32, #tpu.memory_space<vmem>>, vector<8x4xf32>,
    %c0_5 = arith.constant 0 : index
    %c0_6 = arith.constant 0 : index
    %4 = vector.load %arg10[%c0_5, %c0_6] : memref<8x128xf32, #tpu.memory_space<vmem>>, vector<8x128xf32>
    %c0_7 = arith.constant 0 : index
    %c0_8 = arith.constant 0 : index
    %5 = vector.load %arg3[%c0_7, %c0_8] : memref<128x128xbf16, #tpu.memory_space<vmem>>, vector<128x128xbf16>
    %c0_9 = arith.constant 0 : index
    %c0_10 = arith.constant 0 : index
    %6 = vector.load %arg4[%c0_9, %c0_10] : memref<1x128xf32, #tpu.memory_space<vmem>>, vector<1x128xf32>
    %7 = arith.truncf %4 : vector<8x128xf32> to vector<8x128xbf16>
    %cst_11 = arith.constant dense<0.000000e+00> : vector<8x128xf32>
    %8 = tpu.matmul %7, %5, %cst_11 {dimension_numbers = #tpu.dot_dimension_numbers<[1], [0], [0], [1], [0, 0, 1, 1], [], []>} : vector<8x128xbf16>, vector<128x128xbf16>, vector<8x128xf32> -> vector<8x128xf32>
    %9 = vector.broadcast %6 : vector<1x128xf32> to vector<8x128xf32>
    %10 = arith.addf %8, %9 : vector<8x128xf32>
    %cst_12 = arith.constant 0.000000e+00 : f32
    %11 = vector.broadcast %cst_12 : f32 to vector<8x128xf32>
    %12 = arith.maximumf %10, %11 : vector<8x128xf32>
    %c0_13 = arith.constant 0 : index
    %c0_14 = arith.constant 0 : index
    %13 = vector.load %arg5[%c0_13, %c0_14] : memref<128x128xbf16, #tpu.memory_space<vmem>>, vector<128x128xbf16>
    %c0_15 = arith.constant 0 : index
    %c0_16 = arith.constant 0 : index
    %14 = vector.load %arg6[%c0_15, %c0_16] : memref<1x128xf32, #tpu.memory_space<vmem>>, vector<1x128xf32>
    %15 = arith.truncf %12 : vector<8x128xf32> to vector<8x128xbf16>
    %cst_17 = arith.constant dense<0.000000e+00> : vector<8x128xf32>
    %16 = tpu.matmul %15, %13, %cst_17 {dimension_numbers = #tpu.dot_dimension_numbers<[1], [0], [0], [1], [0, 0, 1, 1], [], []>} : vector<8x128xbf16>, vector<128x128xbf16>, vector<8x128xf32> -> vector<8x128xf32>
    %17 = vector.broadcast %14 : vector<1x128xf32> to vector<8x128xf32>
    %18 = arith.addf %16, %17 : vector<8x128xf32>
    %cst_18 = arith.constant 0.000000e+00 : f32
    %19 = vector.broadcast %cst_18 : f32 to vector<8x128xf32>
    %20 = arith.cmpf ogt, %18, %19 : vector<8x128xf32>
    %21 = math.exp %18 : vector<8x128xf32>
    %cst_19 = arith.constant 1.000000e+00 : f32
    %22 = vector.broadcast %cst_19 : f32 to vector<8x128xf32>
    %23 = arith.subf %21, %22 : vector<8x128xf32>
    %24 = arith.select %20, %18, %23 : vector<8x128xi1>, vector<8x128xf32>
    %c0_20 = arith.constant 0 : index
    %c0_21 = arith.constant 0 : index
    %25 = vector.load %arg7[%c0_20, %c0_21] : memref<128x128xbf16, #tpu.memory_space<vmem>>, vector<128x128xbf16>
    %c0_22 = arith.constant 0 : index
    %c0_23 = arith.constant 0 : index
    %26 = vector.load %arg8[%c0_22, %c0_23] : memref<1x128xf32, #tpu.memory_space<vmem>>, vector<1x128xf32>
    %27 = arith.truncf %24 : vector<8x128xf32> to vector<8x128xbf16>
    %cst_24 = arith.constant dense<0.000000e+00> : vector<8x128xf32>
    %28 = tpu.matmul %27, %25, %cst_24 {dimension_numbers = #tpu.dot_dimension_numbers<[1], [0], [0], [1], [0, 0, 1, 1], [], []>} : vector<8x128xbf16>, vector<128x128xbf16>, vector<8x128xf32> -> vector<8x128xf32>
    %29 = vector.broadcast %26 : vector<1x128xf32> to vector<8x128xf32>
    %30 = arith.addf %28, %29 : vector<8x128xf32>
    %31 = vector.extract_strided_slice %30 {offsets = [0, 0], sizes = [8, 1], strides = [1, 1]} : vector<8x128xf32> to vector<8x1xf32>
    %c0_25 = arith.constant 0 : index
    %c0_26 = arith.constant 0 : index
    %32 = vector.load %arg9[%c0_25, %c0_26] : memref<8x1xf32, #tpu.memory_space<vmem>>, vector<8x1xf32>
    tpu.vector_store %arg9[%c0_25, %c0_26], %31 {strides = array<i32>} : memref<8x1xf32, #tpu.memory_space<vmem>>, vector<8x1xf32>,
    return
  }
  func.func @transform_0(%arg0: i32, %arg1: memref<1xi32, #tpu.memory_space<smem>>) -> (i32, i32) {
    %c0_i32 = arith.constant 0 : i32
    %c0_i32_0 = arith.constant 0 : i32
    return %arg0, %c0_i32 : i32, i32
  }
  func.func @transform_1(%arg0: i32, %arg1: memref<1xi32, #tpu.memory_space<smem>>) -> (i32, i32) {
    %c0_i32 = arith.constant 0 : i32
    %c0_i32_0 = arith.constant 0 : i32
    %c0_i32_1 = arith.constant 0 : i32
    return %c0_i32, %c0_i32_0 : i32, i32
  }
  func.func @transform_2(%arg0: i32, %arg1: memref<1xi32, #tpu.memory_space<smem>>) -> (i32, i32) {
    %c0_i32 = arith.constant 0 : i32
    %c0_i32_0 = arith.constant 0 : i32
    %c0_i32_1 = arith.constant 0 : i32
    return %c0_i32, %c0_i32_0 : i32, i32
  }
  func.func @transform_3(%arg0: i32, %arg1: memref<1xi32, #tpu.memory_space<smem>>) -> (i32, i32) {
    %c0_i32 = arith.constant 0 : i32
    %c0_i32_0 = arith.constant 0 : i32
    %c0_i32_1 = arith.constant 0 : i32
    return %c0_i32, %c0_i32_0 : i32, i32
  }
  func.func @transform_4(%arg0: i32, %arg1: memref<1xi32, #tpu.memory_space<smem>>) -> (i32, i32) {
    %c0_i32 = arith.constant 0 : i32
    %c0_i32_0 = arith.constant 0 : i32
    %c0_i32_1 = arith.constant 0 : i32
    return %c0_i32, %c0_i32_0 : i32, i32
  }
  func.func @transform_5(%arg0: i32, %arg1: memref<1xi32, #tpu.memory_space<smem>>) -> (i32, i32) {
    %c0_i32 = arith.constant 0 : i32
    %c0_i32_0 = arith.constant 0 : i32
    %c0_i32_1 = arith.constant 0 : i32
    return %c0_i32, %c0_i32_0 : i32, i32
  }
  func.func @transform_6(%arg0: i32, %arg1: memref<1xi32, #tpu.memory_space<smem>>) -> (i32, i32) {
    %c0_i32 = arith.constant 0 : i32
    %c0_i32_0 = arith.constant 0 : i32
    %c0_i32_1 = arith.constant 0 : i32
    return %c0_i32, %c0_i32_0 : i32, i32
  }
  func.func @transform_7(%arg0: i32, %arg1: memref<1xi32, #tpu.memory_space<smem>>) -> (i32, i32) {
    %c0_i32 = arith.constant 0 : i32
    %c0_i32_0 = arith.constant 0 : i32
    return %arg0, %c0_i32 : i32, i32
  }
}

</mosaic_0001>

<llo_original>
// kernel: tpu_custom_call.1
$region0: #{tpu_custom_call.1}
  #allocation0 [shape = 'u32[]', space=smem, size = 0x4, offset = 0x4, fixed_abs, tag = 'smem constant byte address 0x4 - core index']
  #allocation1 [shape = 'u32[72,128]{1,0:T(1,128)}', space=vmem, size = 0x9000, scoped, tag = 'internal scratch']
  #allocation2 [shape = 'f32[8,128]{1,0:T(8,128)}', space=vmem, size = 0x1000, scoped, tag = 'scratch operand']
  #allocation3 [shape = 's32[1]{0}', space=sflag, size = 0x4, scoped, tag = 'scoped memory for tpu_custom_call.1']
  #allocation4 [shape = 's32[1]{0:T(128)S(6)}', space=smem, size = 0x200, scoped, tag = 'prefetched SMEM operand 0']
  %s0 = inlined_call_operand.<no memory space> [shape: s32[1], index: 0, kind: input, shape index: {}]
  %s1 = inlined_call_operand.vmem [shape: f32[8,4], index: 1, kind: input, shape index: {}]
  %s2 = inlined_call_operand.hbm [shape: bf16[128,128], index: 2, kind: input, shape index: {}]
  %s3 = inlined_call_operand.vmem [shape: f32[1,128], index: 3, kind: input, shape index: {}]
  %s4 = inlined_call_operand.hbm [shape: bf16[128,128], index: 4, kind: input, shape index: {}]
  %s5 = inlined_call_operand.vmem [shape: f32[1,128], index: 5, kind: input, shape index: {}]
  %s6 = inlined_call_operand.hbm [shape: bf16[128,128], index: 6, kind: input, shape index: {}]
  %s7 = inlined_call_operand.vmem [shape: f32[1,128], index: 7, kind: input, shape index: {}]
  %s8 = inlined_call_operand.vmem [shape: f32[8,1], index: 8, kind: output, shape index: {}]
  %s9 = sld [smem:[#allocation0]]
  $region50: #{tpu_custom_call.1} parent=0
    _
  %s11 = ssub.s32 1, %s9
  %s12 = scalar_select 0, %s11, %s9
  %13 = sst [smem:[#allocation4]] %s0
  $region1: #{tpu_custom_call.1} parent=0
    #allocation5 [shape = 'u8[32768]{0}', space=vmem, size = 0x8000, scoped, tag = 'input window, operand 2, single buffered']
    #allocation6 [shape = 's32[1]{0}', space=sflag, size = 0x4, scoped, tag = 'scoped memory for tpu_custom_call.1']
    #allocation7 [shape = 'u8[32768]{0}', space=vmem, size = 0x8000, scoped, tag = 'input window, operand 4, single buffered']
    #allocation8 [shape = 's32[1]{0}', space=sflag, size = 0x4, scoped, tag = 'scoped memory for tpu_custom_call.1']
    #allocation9 [shape = 'u8[32768]{0}', space=vmem, size = 0x8000, scoped, tag = 'input window, operand 6, single buffered']
    %14 = vsyncpa [#allocation6], 0
    %15 = vsyncpa [#allocation8], 0
    // Predicated region
    $region2: #{tpu_custom_call.1} parent=1 // pred_check
      _
    $region3: #{tpu_custom_call.1} parent=1 // pred_check_branch
      %17 = sbr.rel (0) target = $region5
    $region4: #{tpu_custom_call.1} parent=1 // pred_region
      _
    $region5: #{tpu_custom_call.1} parent=1 // pred_fallthru
      _
    // Predicated region
    $region6: #{tpu_custom_call.1} parent=1 // pred_check
      _
    $region7: #{tpu_custom_call.1} parent=1 // pred_check_branch
      %19 = sbr.rel (0) target = $region9
    $region8: #{tpu_custom_call.1} parent=1 // pred_region
      %21 = vsyncadd [#allocation6], 0
      %s22 = sshll.u32 %s2, 4
      %s23 = int_to_ptr.hbm [resolvable:$true] %s22
      %s24 = sshll.u32 [#allocation5], 4
      %s25 = int_to_ptr.vmem [resolvable:$true] %s24
      %30 = dma.hbm_to_vmem [thread:$0]  %s23, 1024, %s25, [#allocation6], 64, 64, 4
    $region9: #{tpu_custom_call.1} parent=1 // pred_fallthru
      _
    // Predicated region
    $region10: #{tpu_custom_call.1} parent=1 // pred_check
      _
    $region11: #{tpu_custom_call.1} parent=1 // pred_check_branch
      %32 = sbr.rel (0) target = $region13
    $region12: #{tpu_custom_call.1} parent=1 // pred_region
      _
    $region13: #{tpu_custom_call.1} parent=1 // pred_fallthru
      _
    // Predicated region
    $region14: #{tpu_custom_call.1} parent=1 // pred_check
      _
    $region15: #{tpu_custom_call.1} parent=1 // pred_check_branch
      %34 = sbr.rel (0) target = $region17
    $region16: #{tpu_custom_call.1} parent=1 // pred_region
      %36 = vsyncadd [#allocation8], 0
      %s37 = sshll.u32 %s4, 4
      %s38 = int_to_ptr.hbm [resolvable:$true] %s37
      %s39 = sshll.u32 [#allocation7], 4
      %s40 = int_to_ptr.vmem [resolvable:$true] %s39
      %45 = dma.hbm_to_vmem [thread:$0]  %s38, 1024, %s40, [#allocation8], 64, 64, 4
    $region17: #{tpu_custom_call.1} parent=1 // pred_fallthru
      _
    // Predicated region
    $region18: #{tpu_custom_call.1} parent=1 // pred_check
      _
    $region19: #{tpu_custom_call.1} parent=1 // pred_check_branch
      %47 = sbr.rel (0) target = $region21
    $region20: #{tpu_custom_call.1} parent=1 // pred_region
      _
    $region21: #{tpu_custom_call.1} parent=1 // pred_fallthru
      _
    // Predicated region
    $region22: #{tpu_custom_call.1} parent=1 // pred_check
      _
    $region23: #{tpu_custom_call.1} parent=1 // pred_check_branch
      %49 = sbr.rel (0) target = $region25
    $region24: #{tpu_custom_call.1} parent=1 // pred_region
      %51 = vsyncadd [#allocation8], 0
      %s52 = sshll.u32 %s6, 4
      %s53 = int_to_ptr.hbm [resolvable:$true] %s52
      %s54 = sshll.u32 [#allocation9], 4
      %s55 = int_to_ptr.vmem [resolvable:$true] %s54
      %60 = dma.hbm_to_vmem [thread:$0]  %s53, 1024, %s55, [#allocation8], 64, 64, 4
    $region25: #{tpu_custom_call.1} parent=1 // pred_fallthru
      _
    // Predicated region
    $region26: #{tpu_custom_call.1} parent=1 // pred_check
      _
    $region27: #{tpu_custom_call.1} parent=1 // pred_check_branch
      %62 = sbr.rel (0) target = $region29
    $region28: #{tpu_custom_call.1} parent=1 // pred_region
      _
    $region29: #{tpu_custom_call.1} parent=1 // pred_fallthru
      _
    // Predicated region
    $region30: #{tpu_custom_call.1} parent=1 // pred_check
      _
    $region31: #{tpu_custom_call.1} parent=1 // pred_check_branch
      %64 = sbr.rel (0) target = $region33
    $region32: #{tpu_custom_call.1} parent=1 // pred_region
      %66 = dma.done [#allocation6], 1024
    $region33: #{tpu_custom_call.1} parent=1 // pred_fallthru
      _
    // Predicated region
    $region34: #{tpu_custom_call.1} parent=1 // pred_check
      _
    $region35: #{tpu_custom_call.1} parent=1 // pred_check_branch
      %68 = sbr.rel (0) target = $region37
    $region36: #{tpu_custom_call.1} parent=1 // pred_region
      %70 = dma.done [#allocation8], 1024
    $region37: #{tpu_custom_call.1} parent=1 // pred_fallthru
      _
    // Predicated region
    $region38: #{tpu_custom_call.1} parent=1 // pred_check
      _
    $region39: #{tpu_custom_call.1} parent=1 // pred_check_branch
      %72 = sbr.rel (0) target = $region41
    $region40: #{tpu_custom_call.1} parent=1 // pred_region
      %74 = dma.done [#allocation8], 1024
    $region41: #{tpu_custom_call.1} parent=1 // pred_fallthru
      _
    %75 = vst [vmem:[#allocation2] sm:$0xff] 0.0
    %v76 = vld [vmem:[%s1] sm:$0xff]
    %vm77 = vcmask 31744
    %78 = vst.msk [vmem:[#allocation2] sm:$0xff] %vm77, %v76
    %v79 = vld [vmem:[#allocation2] sm:$0xff]
    %v80 = vld [vmem:[#allocation5] sm:$0xf]
    %v81 = vld [vmem:[#allocation5 + $0x4] sm:$0xf]
    %v82 = vld [vmem:[#allocation5 + $0x8] sm:$0xf]
    %v83 = vld [vmem:[#allocation5 + $0xc] sm:$0xf]
    %v84 = vld [vmem:[#allocation5 + $0x10] sm:$0xf]
    %v85 = vld [vmem:[#allocation5 + $0x14] sm:$0xf]
    %v86 = vld [vmem:[#allocation5 + $0x18] sm:$0xf]
    %v87 = vld [vmem:[#allocation5 + $0x1c] sm:$0xf]
    %v88 = vld [vmem:[#allocation5 + $0x20] sm:$0xf]
    %v89 = vld [vmem:[#allocation5 + $0x24] sm:$0xf]
    %v90 = vld [vmem:[#allocation5 + $0x28] sm:$0xf]
    %v91 = vld [vmem:[#allocation5 + $0x2c] sm:$0xf]
    %v92 = vld [vmem:[#allocation5 + $0x30] sm:$0xf]
    %v93 = vld [vmem:[#allocation5 + $0x34] sm:$0xf]
    %v94 = vld [vmem:[#allocation5 + $0x38] sm:$0xf]
    %v95 = vld [vmem:[#allocation5 + $0x3c] sm:$0xf]
    %v96 = vld [vmem:[%s3] sm:$0x1]
    %v97 = vpack.c.bf16 %v79, %v79
    %v99 = vperm.slane %v96, 0
    %v117 = vunpack.c.l.b16 %v80
    %v118 = vunpack.c.l.b16 %v81
    %v119 = vunpack.c.l.b16 %v82
    %v120 = vunpack.c.l.b16 %v83
    %v121 = vunpack.c.l.b16 %v84
    %v122 = vunpack.c.l.b16 %v85
    %v123 = vunpack.c.l.b16 %v86
    %v124 = vunpack.c.l.b16 %v87
    %v125 = vunpack.c.l.b16 %v88
    %v126 = vunpack.c.l.b16 %v89
    %v127 = vunpack.c.l.b16 %v90
    %v128 = vunpack.c.l.b16 %v91
    %v129 = vunpack.c.l.b16 %v92
    %v130 = vunpack.c.l.b16 %v93
    %v131 = vunpack.c.l.b16 %v94
    %v132 = vunpack.c.l.b16 %v95
    %v133 = vpack.c.b16 %v118, %v117
    %v134 = vpack.c.b16 %v120, %v119
    %v135 = vpack.c.b16 %v122, %v121
    %v136 = vpack.c.b16 %v124, %v123
    %v137 = vpack.c.b16 %v126, %v125
    %v138 = vpack.c.b16 %v128, %v127
    %v139 = vpack.c.b16 %v130, %v129
    %v140 = vpack.c.b16 %v132, %v131
    %149 = vmatpush.bf16.msra.mxu0 %v140
    %150 = vmatpush.bf16.msra.mxu0 %v139
    %151 = vmatpush.bf16.msra.mxu0 %v138
    %152 = vmatpush.bf16.msra.mxu0 %v137
    %153 = vmatpush.bf16.msra.mxu0 %v136
    %154 = vmatpush.bf16.msra.mxu0 %v135
    %155 = vmatpush.bf16.msra.mxu0 %v134
    %156 = vmatpush.bf16.msra.mxu0 %v133
    %157 = vmatmul.bf16.gmra.mxu0 %v97
    %v158 = vpop.f32.mrf.mxu0
    %v159 = vadd.f32 %v99, %v158
    %v160 = vpop.f32.mrf.mxu0
    %161 = vdwg.mxu0
    %v162 = vmax.f32 %v159, 0.0
    %v163 = vld [vmem:[#allocation7] sm:$0xf]
    %v164 = vld [vmem:[#allocation7 + $0x4] sm:$0xf]
    %v165 = vld [vmem:[#allocation7 + $0x8] sm:$0xf]
    %v166 = vld [vmem:[#allocation7 + $0xc] sm:$0xf]
    %v167 = vld [vmem:[#allocation7 + $0x10] sm:$0xf]
    %v168 = vld [vmem:[#allocation7 + $0x14] sm:$0xf]
    %v169 = vld [vmem:[#allocation7 + $0x18] sm:$0xf]
    %v170 = vld [vmem:[#allocation7 + $0x1c] sm:$0xf]
    %v171 = vld [vmem:[#allocation7 + $0x20] sm:$0xf]
    %v172 = vld [vmem:[#allocation7 + $0x24] sm:$0xf]
    %v173 = vld [vmem:[#allocation7 + $0x28] sm:$0xf]
    %v174 = vld [vmem:[#allocation7 + $0x2c] sm:$0xf]
    %v175 = vld [vmem:[#allocation7 + $0x30] sm:$0xf]
    %v176 = vld [vmem:[#allocation7 + $0x34] sm:$0xf]
    %v177 = vld [vmem:[#allocation7 + $0x38] sm:$0xf]
    %v178 = vld [vmem:[#allocation7 + $0x3c] sm:$0xf]
    %v179 = vld [vmem:[%s5] sm:$0x1]
    %v180 = vpack.c.bf16 %v162, %v162
    %v182 = vperm.slane %v179, 0
    %v200 = vunpack.c.l.b16 %v163
    %v201 = vunpack.c.l.b16 %v164
    %v202 = vunpack.c.l.b16 %v165
    %v203 = vunpack.c.l.b16 %v166
    %v204 = vunpack.c.l.b16 %v167
    %v205 = vunpack.c.l.b16 %v168
    %v206 = vunpack.c.l.b16 %v169
    %v207 = vunpack.c.l.b16 %v170
    %v208 = vunpack.c.l.b16 %v171
    %v209 = vunpack.c.l.b16 %v172
    %v210 = vunpack.c.l.b16 %v173
    %v211 = vunpack.c.l.b16 %v174
    %v212 = vunpack.c.l.b16 %v175
    %v213 = vunpack.c.l.b16 %v176
    %v214 = vunpack.c.l.b16 %v177
    %v215 = vunpack.c.l.b16 %v178
    %v216 = vpack.c.b16 %v201, %v200
    %v217 = vpack.c.b16 %v203, %v202
    %v218 = vpack.c.b16 %v205, %v204
    %v219 = vpack.c.b16 %v207, %v206
    %v220 = vpack.c.b16 %v209, %v208
    %v221 = vpack.c.b16 %v211, %v210
    %v222 = vpack.c.b16 %v213, %v212
    %v223 = vpack.c.b16 %v215, %v214
    %232 = vmatpush.bf16.msra.mxu0 %v223
    %233 = vmatpush.bf16.msra.mxu0 %v222
    %234 = vmatpush.bf16.msra.mxu0 %v221
    %235 = vmatpush.bf16.msra.mxu0 %v220
    %236 = vmatpush.bf16.msra.mxu0 %v219
    %237 = vmatpush.bf16.msra.mxu0 %v218
    %238 = vmatpush.bf16.msra.mxu0 %v217
    %239 = vmatpush.bf16.msra.mxu0 %v216
    %240 = vmatmul.bf16.gmra.mxu0 %v180
    %v241 = vpop.f32.mrf.mxu0
    %v242 = vadd.f32 %v182, %v241
    %v243 = vpop.f32.mrf.mxu0
    %244 = vdwg.mxu0
    %vm245 = vcmp.gt.f32.partialorder %v242, 0.0
    %v246 = vmul.f32 %v242, 1.442695
    %v247 = vpow.pop %v246
    %v248 = vsub.f32 %v247, 1.0
    %v249 = vsel %vm245, %v242, %v248
    %v250 = vld [vmem:[#allocation9] sm:$0xf]
    %v251 = vld [vmem:[#allocation9 + $0x4] sm:$0xf]
    %v252 = vld [vmem:[#allocation9 + $0x8] sm:$0xf]
    %v253 = vld [vmem:[#allocation9 + $0xc] sm:$0xf]
    %v254 = vld [vmem:[#allocation9 + $0x10] sm:$0xf]
    %v255 = vld [vmem:[#allocation9 + $0x14] sm:$0xf]
    %v256 = vld [vmem:[#allocation9 + $0x18] sm:$0xf]
    %v257 = vld [vmem:[#allocation9 + $0x1c] sm:$0xf]
    %v258 = vld [vmem:[#allocation9 + $0x20] sm:$0xf]
    %v259 = vld [vmem:[#allocation9 + $0x24] sm:$0xf]
    %v260 = vld [vmem:[#allocation9 + $0x28] sm:$0xf]
    %v261 = vld [vmem:[#allocation9 + $0x2c] sm:$0xf]
    %v262 = vld [vmem:[#allocation9 + $0x30] sm:$0xf]
    %v263 = vld [vmem:[#allocation9 + $0x34] sm:$0xf]
    %v264 = vld [vmem:[#allocation9 + $0x38] sm:$0xf]
    %v265 = vld [vmem:[#allocation9 + $0x3c] sm:$0xf]
    %v266 = vld [vmem:[%s7] sm:$0x1]
    %v267 = vpack.c.bf16 %v249, %v249
    %v269 = vperm.slane %v266, 0
    %v287 = vunpack.c.l.b16 %v250
    %v288 = vunpack.c.l.b16 %v251
    %v289 = vunpack.c.l.b16 %v252
    %v290 = vunpack.c.l.b16 %v253
    %v291 = vunpack.c.l.b16 %v254
    %v292 = vunpack.c.l.b16 %v255
    %v293 = vunpack.c.l.b16 %v256
    %v294 = vunpack.c.l.b16 %v257
    %v295 = vunpack.c.l.b16 %v258
    %v296 = vunpack.c.l.b16 %v259
    %v297 = vunpack.c.l.b16 %v260
    %v298 = vunpack.c.l.b16 %v261
    %v299 = vunpack.c.l.b16 %v262
    %v300 = vunpack.c.l.b16 %v263
    %v301 = vunpack.c.l.b16 %v264
    %v302 = vunpack.c.l.b16 %v265
    %v303 = vpack.c.b16 %v288, %v287
    %v304 = vpack.c.b16 %v290, %v289
    %v305 = vpack.c.b16 %v292, %v291
    %v306 = vpack.c.b16 %v294, %v293
    %v307 = vpack.c.b16 %v296, %v295
    %v308 = vpack.c.b16 %v298, %v297
    %v309 = vpack.c.b16 %v300, %v299
    %v310 = vpack.c.b16 %v302, %v301
    %319 = vmatpush.bf16.msra.mxu0 %v310
    %320 = vmatpush.bf16.msra.mxu0 %v309
    %321 = vmatpush.bf16.msra.mxu0 %v308
    %322 = vmatpush.bf16.msra.mxu0 %v307
    %323 = vmatpush.bf16.msra.mxu0 %v306
    %324 = vmatpush.bf16.msra.mxu0 %v305
    %325 = vmatpush.bf16.msra.mxu0 %v304
    %326 = vmatpush.bf16.msra.mxu0 %v303
    %327 = vmatmul.bf16.gmra.mxu0 %v267
    %v328 = vpop.f32.mrf.mxu0
    %v329 = vadd.f32 %v269, %v328
    %v330 = vpop.f32.mrf.mxu0
    %331 = vdwg.mxu0
    %vm332 = vcmask 7168
    %333 = vst.msk [vmem:[%s8] sm:$0xff] %vm332, %v329
    // Predicated region
    $region42: #{tpu_custom_call.1} parent=1 // pred_check
      _
    $region43: #{tpu_custom_call.1} parent=1 // pred_check_branch
      %335 = sbr.rel (0) target = $region45
    $region44: #{tpu_custom_call.1} parent=1 // pred_region
      _
    $region45: #{tpu_custom_call.1} parent=1 // pred_fallthru
      _
    // Predicated region
    $region46: #{tpu_custom_call.1} parent=1 // pred_check
      _
    $region47: #{tpu_custom_call.1} parent=1 // pred_check_branch
      %337 = sbr.rel (0) target = $region49
    $region48: #{tpu_custom_call.1} parent=1 // pred_region
      _
    $region49: #{tpu_custom_call.1} parent=1 // pred_fallthru
      _
    %338 = vsyncpa [#allocation6], 1
    %339 = vsyncpa [#allocation8], 1

// kernel: tpu_custom_call.1
$region0: #{tpu_custom_call.1}
  #allocation0 [shape = 'u32[]', space=smem, size = 0x4, offset = 0x4, fixed_abs, tag = 'smem constant byte address 0x4 - core index']
  #allocation1 [shape = 'u32[72,128]{1,0:T(1,128)}', space=vmem, size = 0x9000, scoped, tag = 'internal scratch']
  #allocation2 [shape = 'f32[8,128]{1,0:T(8,128)}', space=vmem, size = 0x1000, scoped, tag = 'scratch operand']
  #allocation3 [shape = 's32[1]{0}', space=sflag, size = 0x4, scoped, tag = 'scoped memory for tpu_custom_call.1']
  #allocation4 [shape = 's32[1]{0:T(128)S(6)}', space=smem, size = 0x200, scoped, tag = 'prefetched SMEM operand 0']
  %s0 = inlined_call_operand.<no memory space> [shape: s32[1], index: 0, kind: input, shape index: {}]
  %s1 = inlined_call_operand.vmem [shape: f32[8,4], index: 1, kind: input, shape index: {}]
  %s2 = inlined_call_operand.hbm [shape: bf16[128,128], index: 2, kind: input, shape index: {}]
  %s3 = inlined_call_operand.vmem [shape: f32[1,128], index: 3, kind: input, shape index: {}]
  %s4 = inlined_call_operand.hbm [shape: bf16[128,128], index: 4, kind: input, shape index: {}]
  %s5 = inlined_call_operand.vmem [shape: f32[1,128], index: 5, kind: input, shape index: {}]
  %s6 = inlined_call_operand.hbm [shape: bf16[128,128], index: 6, kind: input, shape index: {}]
  %s7 = inlined_call_operand.vmem [shape: f32[1,128], index: 7, kind: input, shape index: {}]
  %s8 = inlined_call_operand.vmem [shape: f32[8,1], index: 8, kind: output, shape index: {}]
  %s9 = sld [smem:[#allocation0]]
  $region50: #{tpu_custom_call.1} parent=0
    _
  %s11 = ssub.s32 1, %s9
  %s12 = scalar_select 0, %s11, %s9
  %13 = sst [smem:[#allocation4]] %s0
  $region1: #{tpu_custom_call.1} parent=0
    #allocation5 [shape = 'u8[32768]{0}', space=vmem, size = 0x8000, scoped, tag = 'input window, operand 2, single buffered']
    #allocation6 [shape = 's32[1]{0}', space=sflag, size = 0x4, scoped, tag = 'scoped memory for tpu_custom_call.1']
    #allocation7 [shape = 'u8[32768]{0}', space=vmem, size = 0x8000, scoped, tag = 'input window, operand 4, single buffered']
    #allocation8 [shape = 's32[1]{0}', space=sflag, size = 0x4, scoped, tag = 'scoped memory for tpu_custom_call.1']
    #allocation9 [shape = 'u8[32768]{0}', space=vmem, size = 0x8000, scoped, tag = 'input window, operand 6, single buffered']
    %14 = vsyncpa [#allocation6], 0
    %15 = vsyncpa [#allocation8], 0
    // Predicated region
    $region2: #{tpu_custom_call.1} parent=1 // pred_check
      _
    $region3: #{tpu_custom_call.1} parent=1 // pred_check_branch
      %17 = sbr.rel (0) target = $region5
    $region4: #{tpu_custom_call.1} parent=1 // pred_region
      _
    $region5: #{tpu_custom_call.1} parent=1 // pred_fallthru
      _
    // Predicated region
    $region6: #{tpu_custom_call.1} parent=1 // pred_check
      _
    $region7: #{tpu_custom_call.1} parent=1 // pred_check_branch
      %19 = sbr.rel (0) target = $region9
    $region8: #{tpu_custom_call.1} parent=1 // pred_region
      %21 = vsyncadd [#allocation6], 0
      %s22 = sshll.u32 %s2, 4
      %s23 = int_to_ptr.hbm [resolvable:$true] %s22
      %s24 = sshll.u32 [#allocation5], 4
      %s25 = int_to_ptr.vmem [resolvable:$true] %s24
      %30 = dma.hbm_to_vmem [thread:$0]  %s23, 1024, %s25, [#allocation6], 64, 64, 4
    $region9: #{tpu_custom_call.1} parent=1 // pred_fallthru
      _
    // Predicated region
    $region10: #{tpu_custom_call.1} parent=1 // pred_check
      _
    $region11: #{tpu_custom_call.1} parent=1 // pred_check_branch
      %32 = sbr.rel (0) target = $region13
    $region12: #{tpu_custom_call.1} parent=1 // pred_region
      _
    $region13: #{tpu_custom_call.1} parent=1 // pred_fallthru
      _
    // Predicated region
    $region14: #{tpu_custom_call.1} parent=1 // pred_check
      _
    $region15: #{tpu_custom_call.1} parent=1 // pred_check_branch
      %34 = sbr.rel (0) target = $region17
    $region16: #{tpu_custom_call.1} parent=1 // pred_region
      %36 = vsyncadd [#allocation8], 0
      %s37 = sshll.u32 %s4, 4
      %s38 = int_to_ptr.hbm [resolvable:$true] %s37
      %s39 = sshll.u32 [#allocation7], 4
      %s40 = int_to_ptr.vmem [resolvable:$true] %s39
      %45 = dma.hbm_to_vmem [thread:$0]  %s38, 1024, %s40, [#allocation8], 64, 64, 4
    $region17: #{tpu_custom_call.1} parent=1 // pred_fallthru
      _
    // Predicated region
    $region18: #{tpu_custom_call.1} parent=1 // pred_check
      _
    $region19: #{tpu_custom_call.1} parent=1 // pred_check_branch
      %47 = sbr.rel (0) target = $region21
    $region20: #{tpu_custom_call.1} parent=1 // pred_region
      _
    $region21: #{tpu_custom_call.1} parent=1 // pred_fallthru
      _
    // Predicated region
    $region22: #{tpu_custom_call.1} parent=1 // pred_check
      _
    $region23: #{tpu_custom_call.1} parent=1 // pred_check_branch
      %49 = sbr.rel (0) target = $region25
    $region24: #{tpu_custom_call.1} parent=1 // pred_region
      %51 = vsyncadd [#allocation8], 0
      %s52 = sshll.u32 %s6, 4
      %s53 = int_to_ptr.hbm [resolvable:$true] %s52
      %s54 = sshll.u32 [#allocation9], 4
      %s55 = int_to_ptr.vmem [resolvable:$true] %s54
      %60 = dma.hbm_to_vmem [thread:$0]  %s53, 1024, %s55, [#allocation8], 64, 64, 4
    $region25: #{tpu_custom_call.1} parent=1 // pred_fallthru
      _
    // Predicated region
    $region26: #{tpu_custom_call.1} parent=1 // pred_check
      _
    $region27: #{tpu_custom_call.1} parent=1 // pred_check_branch
      %62 = sbr.rel (0) target = $region29
    $region28: #{tpu_custom_call.1} parent=1 // pred_region
      _
    $region29: #{tpu_custom_call.1} parent=1 // pred_fallthru
      _
    // Predicated region
    $region30: #{tpu_custom_call.1} parent=1 // pred_check
      _
    $region31: #{tpu_custom_call.1} parent=1 // pred_check_branch
      %64 = sbr.rel (0) target = $region33
    $region32: #{tpu_custom_call.1} parent=1 // pred_region
      %66 = dma.done [#allocation6], 1024
    $region33: #{tpu_custom_call.1} parent=1 // pred_fallthru
      _
    // Predicated region
    $region34: #{tpu_custom_call.1} parent=1 // pred_check
      _
    $region35: #{tpu_custom_call.1} parent=1 // pred_check_branch
      %68 = sbr.rel (0) target = $region37
    $region36: #{tpu_custom_call.1} parent=1 // pred_region
      %70 = dma.done [#allocation8], 1024
    $region37: #{tpu_custom_call.1} parent=1 // pred_fallthru
      _
    // Predicated region
    $region38: #{tpu_custom_call.1} parent=1 // pred_check
      _
    $region39: #{tpu_custom_call.1} parent=1 // pred_check_branch
      %72 = sbr.rel (0) target = $region41
    $region40: #{tpu_custom_call.1} parent=1 // pred_region
      %74 = dma.done [#allocation8], 1024
    $region41: #{tpu_custom_call.1} parent=1 // pred_fallthru
      _
    %75 = vst [vmem:[#allocation2] sm:$0xff] 0.0
    %v76 = vld [vmem:[%s1] sm:$0xff]
    %vm77 = vcmask 31744
    %78 = vst.msk [vmem:[#allocation2] sm:$0xff] %vm77, %v76
    %v79 = vld [vmem:[#allocation2] sm:$0xff]
    %v80 = vld [vmem:[#allocation5] sm:$0xf]
    %v81 = vld [vmem:[#allocation5 + $0x4] sm:$0xf]
    %v82 = vld [vmem:[#allocation5 + $0x8] sm:$0xf]
    %v83 = vld [vmem:[#allocation5 + $0xc] sm:$0xf]
    %v84 = vld [vmem:[#allocation5 + $0x10] sm:$0xf]
    %v85 = vld [vmem:[#allocation5 + $0x14] sm:$0xf]
    %v86 = vld [vmem:[#allocation5 + $0x18] sm:$0xf]
    %v87 = vld [vmem:[#allocation5 + $0x1c] sm:$0xf]
    %v88 = vld [vmem:[#allocation5 + $0x20] sm:$0xf]
    %v89 = vld [vmem:[#allocation5 + $0x24] sm:$0xf]
    %v90 = vld [vmem:[#allocation5 + $0x28] sm:$0xf]
    %v91 = vld [vmem:[#allocation5 + $0x2c] sm:$0xf]
    %v92 = vld [vmem:[#allocation5 + $0x30] sm:$0xf]
    %v93 = vld [vmem:[#allocation5 + $0x34] sm:$0xf]
    %v94 = vld [vmem:[#allocation5 + $0x38] sm:$0xf]
    %v95 = vld [vmem:[#allocation5 + $0x3c] sm:$0xf]
    %v96 = vld [vmem:[%s3] sm:$0x1]
    %v97 = vpack.c.bf16 %v79, %v79
    %v99 = vperm.slane %v96, 0
    %v117 = vunpack.c.l.b16 %v80
    %v118 = vunpack.c.l.b16 %v81
    %v119 = vunpack.c.l.b16 %v82
    %v120 = vunpack.c.l.b16 %v83
    %v121 = vunpack.c.l.b16 %v84
    %v122 = vunpack.c.l.b16 %v85
    %v123 = vunpack.c.l.b16 %v86
    %v124 = vunpack.c.l.b16 %v87
    %v125 = vunpack.c.l.b16 %v88
    %v126 = vunpack.c.l.b16 %v89
    %v127 = vunpack.c.l.b16 %v90
    %v128 = vunpack.c.l.b16 %v91
    %v129 = vunpack.c.l.b16 %v92
    %v130 = vunpack.c.l.b16 %v93
    %v131 = vunpack.c.l.b16 %v94
    %v132 = vunpack.c.l.b16 %v95
    %v133 = vpack.c.b16 %v118, %v117
    %v134 = vpack.c.b16 %v120, %v119
    %v135 = vpack.c.b16 %v122, %v121
    %v136 = vpack.c.b16 %v124, %v123
    %v137 = vpack.c.b16 %v126, %v125
    %v138 = vpack.c.b16 %v128, %v127
    %v139 = vpack.c.b16 %v130, %v129
    %v140 = vpack.c.b16 %v132, %v131
    %149 = vmatpush.bf16.msra.mxu0 %v140
    %150 = vmatpush.bf16.msra.mxu0 %v139
    %151 = vmatpush.bf16.msra.mxu0 %v138
    %152 = vmatpush.bf16.msra.mxu0 %v137
    %153 = vmatpush.bf16.msra.mxu0 %v136
    %154 = vmatpush.bf16.msra.mxu0 %v135
    %155 = vmatpush.bf16.msra.mxu0 %v134
    %156 = vmatpush.bf16.msra.mxu0 %v133
    %157 = vmatmul.bf16.gmra.mxu0 %v97
    %v158 = vpop.f32.mrf.mxu0
    %v159 = vadd.f32 %v99, %v158
    %v160 = vpop.f32.mrf.mxu0
    %161 = vdwg.mxu0
    %v162 = vmax.f32 %v159, 0.0
    %v163 = vld [vmem:[#allocation7] sm:$0xf]
    %v164 = vld [vmem:[#allocation7 + $0x4] sm:$0xf]
    %v165 = vld [vmem:[#allocation7 + $0x8] sm:$0xf]
    %v166 = vld [vmem:[#allocation7 + $0xc] sm:$0xf]
    %v167 = vld [vmem:[#allocation7 + $0x10] sm:$0xf]
    %v168 = vld [vmem:[#allocation7 + $0x14] sm:$0xf]
    %v169 = vld [vmem:[#allocation7 + $0x18] sm:$0xf]
    %v170 = vld [vmem:[#allocation7 + $0x1c] sm:$0xf]
    %v171 = vld [vmem:[#allocation7 + $0x20] sm:$0xf]
    %v172 = vld [vmem:[#allocation7 + $0x24] sm:$0xf]
    %v173 = vld [vmem:[#allocation7 + $0x28] sm:$0xf]
    %v174 = vld [vmem:[#allocation7 + $0x2c] sm:$0xf]
    %v175 = vld [vmem:[#allocation7 + $0x30] sm:$0xf]
    %v176 = vld [vmem:[#allocation7 + $0x34] sm:$0xf]
    %v177 = vld [vmem:[#allocation7 + $0x38] sm:$0xf]
    %v178 = vld [vmem:[#allocation7 + $0x3c] sm:$0xf]
    %v179 = vld [vmem:[%s5] sm:$0x1]
    %v180 = vpack.c.bf16 %v162, %v162
    %v182 = vperm.slane %v179, 0
    %v200 = vunpack.c.l.b16 %v163
    %v201 = vunpack.c.l.b16 %v164
    %v202 = vunpack.c.l.b16 %v165
    %v203 = vunpack.c.l.b16 %v166
    %v204 = vunpack.c.l.b16 %v167
    %v205 = vunpack.c.l.b16 %v168
    %v206 = vunpack.c.l.b16 %v169
    %v207 = vunpack.c.l.b16 %v170
    %v208 = vunpack.c.l.b16 %v171
    %v209 = vunpack.c.l.b16 %v172
    %v210 = vunpack.c.l.b16 %v173
    %v211 = vunpack.c.l.b16 %v174
    %v212 = vunpack.c.l.b16 %v175
    %v213 = vunpack.c.l.b16 %v176
    %v214 = vunpack.c.l.b16 %v177
    %v215 = vunpack.c.l.b16 %v178
    %v216 = vpack.c.b16 %v201, %v200
    %v217 = vpack.c.b16 %v203, %v202
    %v218 = vpack.c.b16 %v205, %v204
    %v219 = vpack.c.b16 %v207, %v206
    %v220 = vpack.c.b16 %v209, %v208
    %v221 = vpack.c.b16 %v211, %v210
    %v222 = vpack.c.b16 %v213, %v212
    %v223 = vpack.c.b16 %v215, %v214
    %232 = vmatpush.bf16.msra.mxu0 %v223
    %233 = vmatpush.bf16.msra.mxu0 %v222
    %234 = vmatpush.bf16.msra.mxu0 %v221
    %235 = vmatpush.bf16.msra.mxu0 %v220
    %236 = vmatpush.bf16.msra.mxu0 %v219
    %237 = vmatpush.bf16.msra.mxu0 %v218
    %238 = vmatpush.bf16.msra.mxu0 %v217
    %239 = vmatpush.bf16.msra.mxu0 %v216
    %240 = vmatmul.bf16.gmra.mxu0 %v180
    %v241 = vpop.f32.mrf.mxu0
    %v242 = vadd.f32 %v182, %v241
    %v243 = vpop.f32.mrf.mxu0
    %244 = vdwg.mxu0
    %vm245 = vcmp.gt.f32.partialorder %v242, 0.0
    %v246 = vmul.f32 %v242, 1.442695
    %v247 = vpow.pop %v246
    %v248 = vsub.f32 %v247, 1.0
    %v249 = vsel %vm245, %v242, %v248
    %v250 = vld [vmem:[#allocation9] sm:$0xf]
    %v251 = vld [vmem:[#allocation9 + $0x4] sm:$0xf]
    %v252 = vld [vmem:[#allocation9 + $0x8] sm:$0xf]
    %v253 = vld [vmem:[#allocation9 + $0xc] sm:$0xf]
    %v254 = vld [vmem:[#allocation9 + $0x10] sm:$0xf]
    %v255 = vld [vmem:[#allocation9 + $0x14] sm:$0xf]
    %v256 = vld [vmem:[#allocation9 + $0x18] sm:$0xf]
    %v257 = vld [vmem:[#allocation9 + $0x1c] sm:$0xf]
    %v258 = vld [vmem:[#allocation9 + $0x20] sm:$0xf]
    %v259 = vld [vmem:[#allocation9 + $0x24] sm:$0xf]
    %v260 = vld [vmem:[#allocation9 + $0x28] sm:$0xf]
    %v261 = vld [vmem:[#allocation9 + $0x2c] sm:$0xf]
    %v262 = vld [vmem:[#allocation9 + $0x30] sm:$0xf]
    %v263 = vld [vmem:[#allocation9 + $0x34] sm:$0xf]
    %v264 = vld [vmem:[#allocation9 + $0x38] sm:$0xf]
    %v265 = vld [vmem:[#allocation9 + $0x3c] sm:$0xf]
    %v266 = vld [vmem:[%s7] sm:$0x1]
    %v267 = vpack.c.bf16 %v249, %v249
    %v269 = vperm.slane %v266, 0
    %v287 = vunpack.c.l.b16 %v250
    %v288 = vunpack.c.l.b16 %v251
    %v289 = vunpack.c.l.b16 %v252
    %v290 = vunpack.c.l.b16 %v253
    %v291 = vunpack.c.l.b16 %v254
    %v292 = vunpack.c.l.b16 %v255
    %v293 = vunpack.c.l.b16 %v256
    %v294 = vunpack.c.l.b16 %v257
    %v295 = vunpack.c.l.b16 %v258
    %v296 = vunpack.c.l.b16 %v259
    %v297 = vunpack.c.l.b16 %v260
    %v298 = vunpack.c.l.b16 %v261
    %v299 = vunpack.c.l.b16 %v262
    %v300 = vunpack.c.l.b16 %v263
    %v301 = vunpack.c.l.b16 %v264
    %v302 = vunpack.c.l.b16 %v265
    %v303 = vpack.c.b16 %v288, %v287
    %v304 = vpack.c.b16 %v290, %v289
    %v305 = vpack.c.b16 %v292, %v291
    %v306 = vpack.c.b16 %v294, %v293
    %v307 = vpack.c.b16 %v296, %v295
    %v308 = vpack.c.b16 %v298, %v297
    %v309 = vpack.c.b16 %v300, %v299
    %v310 = vpack.c.b16 %v302, %v301
    %319 = vmatpush.bf16.msra.mxu0 %v310
    %320 = vmatpush.bf16.msra.mxu0 %v309
    %321 = vmatpush.bf16.msra.mxu0 %v308
    %322 = vmatpush.bf16.msra.mxu0 %v307
    %323 = vmatpush.bf16.msra.mxu0 %v306
    %324 = vmatpush.bf16.msra.mxu0 %v305
    %325 = vmatpush.bf16.msra.mxu0 %v304
    %326 = vmatpush.bf16.msra.mxu0 %v303
    %327 = vmatmul.bf16.gmra.mxu0 %v267
    %v328 = vpop.f32.mrf.mxu0
    %v329 = vadd.f32 %v269, %v328
    %v330 = vpop.f32.mrf.mxu0
    %331 = vdwg.mxu0
    %vm332 = vcmask 7168
    %333 = vst.msk [vmem:[%s8] sm:$0xff] %vm332, %v329
    // Predicated region
    $region42: #{tpu_custom_call.1} parent=1 // pred_check
      _
    $region43: #{tpu_custom_call.1} parent=1 // pred_check_branch
      %335 = sbr.rel (0) target = $region45
    $region44: #{tpu_custom_call.1} parent=1 // pred_region
      _
    $region45: #{tpu_custom_call.1} parent=1 // pred_fallthru
      _
    // Predicated region
    $region46: #{tpu_custom_call.1} parent=1 // pred_check
      _
    $region47: #{tpu_custom_call.1} parent=1 // pred_check_branch
      %337 = sbr.rel (0) target = $region49
    $region48: #{tpu_custom_call.1} parent=1 // pred_region
      _
    $region49: #{tpu_custom_call.1} parent=1 // pred_fallthru
      _
    %338 = vsyncpa [#allocation6], 1
    %339 = vsyncpa [#allocation8], 1

</llo_original>
